<compile_context>
chip_gen: v7x
topology: tpu7x:2x2x1
jax: 0.10.0
libtpu: 0.0.40
codegen_flags: <defaults>
</compile_context>

<pallas_src>
import jax
import jax.numpy as jnp
from jax.experimental import pallas as pl
from jax.experimental.pallas import tpu as pltpu


def _tap_offsets(k, dil, pad, W):
    offs = []
    for kh in range(k):
        for kw in range(k):
            dh = kh * dil - pad
            dw = kw * dil - pad
            offs.append((dh, dw, dh * W + dw))
    return offs


def _build_pass1(C_in, C_out, H, W, k, dil, pad, n_dw):
    HW = H * W
    KK = k * k
    offsets = _tap_offsets(k, dil, pad, W)

    def kernel(x_ref, wdw_ref, wpw_ref, mask_ref, z_ref, s1_ref, s2_ref):
        # ---- ReLU (upcast in-kernel: a bf16 activation input halves HBM DMA) --
        y = jnp.maximum(x_ref[0].astype(jnp.float32), 0.0)          # (C_in, HW)

        # ---- Hoisted per-tap border masks, materialized once at (C_in, HW) ----
        # Shared by all n_dw depthwise layers; the center tap needs no mask.
        mb = []
        for t, (dh, dw, _) in enumerate(offsets):
            if dh == 0 and dw == 0:
                mb.append(None)
            else:
                mb.append(jnp.broadcast_to(mask_ref[t:t + 1, :], (C_in, HW)))

        # ---- N depthwise KxK convs: static lane rolls (XLU) + FMAs (VPU) ------
        for n in range(n_dw):
            acc = None
            for t, (dh, dw, off) in enumerate(offsets):
                sh = (-off) % HW
                shifted = y if sh == 0 else pltpu.roll(y, shift=sh, axis=1)
                col = n * KK + t
                term = shifted * wdw_ref[:, col:col + 1]             # (C_in, HW)
                if mb[t] is not None:
                    term = term * mb[t]
                acc = term if acc is None else acc + term
            y = acc

        # ---- 1x1 pointwise as C_in broadcast-FMAs on the VPU ------------------
        # TODO(synk): move to MXU (jnp.dot(wpw_ref[...], y)) for larger C_in/C_out.
        z = None
        for ci in range(C_in):
            contrib = y[ci:ci + 1, :] * wpw_ref[:, ci:ci + 1]        # (C_out, HW)
            z = contrib if z is None else z + contrib

        # ---- Lane-dense store + per-batch partial BN statistics ---------------
        z_ref[0] = z
        s1_ref[0] = jnp.sum(z, axis=1, keepdims=True)
        s2_ref[0] = jnp.sum(z * z, axis=1, keepdims=True)

    return kernel


def _build_pass2(B, C_out, HW, eps):
    inv_cnt = 1.0 / float(B * HW)

    def kernel(s1_ref, s2_ref, g_ref, b_ref, z_ref, o_ref):
        # Fold per-batch partial stats (B is small & static: unrolled adds).
        s1 = s1_ref[0]
        s2 = s2_ref[0]
        for i in range(1, B):
            s1 = s1 + s1_ref[i]
            s2 = s2 + s2_ref[i]
        mean = s1 * inv_cnt
        var = s2 * inv_cnt - mean * mean          # biased (training-mode) variance
        scale = jax.lax.rsqrt(var + eps) * g_ref[...]                # (C_out, 1)
        shift = b_ref[...] - mean * scale                            # (C_out, 1)
        o_ref[0] = z_ref[0] * scale + shift                          # lane-dense

    return kernel


def cdil_conv(x_nchw, w_dw, w_pw, gamma, beta, *,
              kernel_size, stride, padding, dilation, N=2, eps=1e-5):
    B, C_in, H, W = x_nchw.shape
    C_out = w_pw.shape[1]
    k = kernel_size
    assert padding == dilation * (k - 1) // 2, (
        "kernel assumes shape-preserving depthwise convs: padding == dilation*(k-1)//2")
    assert stride == 1, "stride > 1 not implemented"  # TODO(synk): strided first conv
    HW = H * W
    KK = k * k

    # Free reshape only (no transpose / pad of the activation tensor).
    x3 = x_nchw.reshape(B, C_in, HW)

    # Lane-major weight tables: one small VMEM tile each (perf review item 1).
    wdw2 = jnp.transpose(w_dw.astype(jnp.float32).reshape(N * KK, C_in))   # (C_in, N*KK)
    wpwT = jnp.transpose(w_pw.astype(jnp.float32))                         # (C_out, C_in)
    g2 = gamma.astype(jnp.float32)[:, None]                                # (C_out, 1)
    b2 = beta.astype(jnp.float32)[:, None]                                 # (C_out, 1)

    # Host-precomputed 0/1 border masks (KK, HW): no integer // or % in-kernel.
    lane = jnp.arange(HW, dtype=jnp.int32)
    hh = lane // W
    ww = lane % W
    mrows = []
    for dh, dw, _ in _tap_offsets(k, dilation, padding, W):
        m = (hh + dh >= 0) & (hh + dh < H) & (ww + dw >= 0) & (ww + dw < W)
        mrows.append(m.astype(jnp.float32))
    masks = jnp.stack(mrows)                                               # (KK, HW)

    parallel = pltpu.CompilerParams(dimension_semantics=("parallel",))

    # Pass 1: per-batch ReLU -> depthwise -> pointwise, plus BN partial sums.
    z, s1, s2 = pl.pallas_call(
        _build_pass1(C_in, C_out, H, W, k, dilation, padding, N),
        out_shape=(jax.ShapeDtypeStruct((B, C_out, HW), jnp.float32),
                   jax.ShapeDtypeStruct((B, C_out, 1), jnp.float32),
                   jax.ShapeDtypeStruct((B, C_out, 1), jnp.float32)),
        grid=(B,),
        in_specs=[pl.BlockSpec((1, C_in, HW), lambda b: (b, 0, 0)),
                  pl.BlockSpec((C_in, N * KK), lambda b: (0, 0)),
                  pl.BlockSpec((C_out, C_in), lambda b: (0, 0)),
                  pl.BlockSpec((KK, HW), lambda b: (0, 0))],
        out_specs=(pl.BlockSpec((1, C_out, HW), lambda b: (b, 0, 0)),
                   pl.BlockSpec((1, C_out, 1), lambda b: (b, 0, 0)),
                   pl.BlockSpec((1, C_out, 1), lambda b: (b, 0, 0))),
        compiler_params=parallel,
    )(x3, wdw2, wpwT, masks)

    # Pass 2: fold stats -> scale/shift, normalize z (lane-dense 256-wide stores).
    out = pl.pallas_call(
        _build_pass2(B, C_out, HW, eps),
        out_shape=jax.ShapeDtypeStruct((B, C_out, HW), jnp.float32),
        grid=(B,),
        in_specs=[pl.BlockSpec((B, C_out, 1), lambda b: (0, 0, 0)),
                  pl.BlockSpec((B, C_out, 1), lambda b: (0, 0, 0)),
                  pl.BlockSpec((C_out, 1), lambda b: (0, 0)),
                  pl.BlockSpec((C_out, 1), lambda b: (0, 0)),
                  pl.BlockSpec((1, C_out, HW), lambda b: (b, 0, 0))],
        out_specs=pl.BlockSpec((1, C_out, HW), lambda b: (b, 0, 0)),
        compiler_params=parallel,
    )(s1, s2, g2, b2, z)

    return out.reshape(B, C_out, H, W)


def cdil_conv_reference(x_nchw, w_dw, w_pw, gamma, beta, *,
                        kernel_size, stride, padding, dilation, N=2, eps=1e-5):
    hi = jax.lax.Precision.HIGHEST
    x = jnp.transpose(x_nchw, (0, 2, 3, 1)).astype(jnp.float32)
    C_in = x.shape[-1]
    y = jnp.maximum(x, 0.0)
    for n in range(N):
        s = stride if n == 0 else 1
        rhs = w_dw[n][:, :, None, :]          # (k, k, 1, C_in) HWIO depthwise
        y = jax.lax.conv_general_dilated(
            y, rhs, window_strides=(s, s),
            padding=[(padding, padding), (padding, padding)],
            rhs_dilation=(dilation, dilation),
            dimension_numbers=('NHWC', 'HWIO', 'NHWC'),
            feature_group_count=C_in, precision=hi)
    z = jnp.einsum('bhwc,cd->bhwd', y, w_pw, precision=hi)
    mean = z.mean(axis=(0, 1, 2), keepdims=True)
    var = ((z - mean) ** 2).mean(axis=(0, 1, 2), keepdims=True)
    out = gamma * (z - mean) / jnp.sqrt(var + eps) + beta
    return jnp.transpose(out, (0, 3, 1, 2))


if __name__ == "__main__":
    # CDilConv(C_in=4, C_out=8, kernel_size=3, stride=1, padding=2, dilation=2, N=2)
    B, C_in, C_out, H, W = 2, 4, 8, 16, 16
    k, stride, padding, dilation, N = 3, 1, 2, 2, 2

    key = jax.random.PRNGKey(0)
    kx, k1, k2 = jax.random.split(key, 3)
    x = jax.random.normal(kx, (B, C_in, H, W), jnp.float32)
    # deterministic synthetic parameters (shapes per the module's __init__)
    w_dw = 0.1 * jax.random.normal(k1, (N, k, k, C_in), jnp.float32)  # depthwise taps
    w_pw = 0.1 * jax.random.normal(k2, (C_in, C_out), jnp.float32)    # 1x1 pointwise
    gamma = jnp.ones((C_out,), jnp.float32)                           # BN affine weight
    beta = jnp.zeros((C_out,), jnp.float32)                           # BN affine bias

    out = cdil_conv(x, w_dw, w_pw, gamma, beta,
                    kernel_size=k, stride=stride, padding=padding,
                    dilation=dilation, N=N)
    out = jax.block_until_ready(out)

    ref = cdil_conv_reference(x, w_dw, w_pw, gamma, beta,
                              kernel_size=k, stride=stride, padding=padding,
                              dilation=dilation, N=N)
    assert out.shape == (B, C_out, H, W)
    max_err = float(jnp.max(jnp.abs(out - ref)))
    assert max_err < 2e-4, f"mismatch vs reference: {max_err}"
    print("KERNEL_OK")
</pallas_src>

<mosaic_0001>
module attributes {stable_mosaic.version = 11 : i64} {
  func.func @kernel(%arg0: i32, %arg1: memref<1x4x256xf32, #tpu.memory_space<vmem>>, %arg2: memref<4x18xf32, #tpu.memory_space<vmem>>, %arg3: memref<8x4xf32, #tpu.memory_space<vmem>>, %arg4: memref<9x256xf32, #tpu.memory_space<vmem>>, %arg5: memref<1x8x256xf32, #tpu.memory_space<vmem>>, %arg6: memref<1x8x1xf32, #tpu.memory_space<vmem>>, %arg7: memref<1x8x1xf32, #tpu.memory_space<vmem>>) attributes {dimension_semantics = [#tpu.dimension_semantics<parallel>], iteration_bounds = array<i64: 2>, scalar_prefetch = 0 : i64, scratch_operands = 0 : i64, tpu.core_type = #tpu.core_type<tc>, window_params = [{transform_indices = @transform_0, window_bounds = array<i64: 1, 4, 256>}, {pipeline_mode = #tpu.pipeline_mode<synchronous>, transform_indices = @transform_1, window_bounds = array<i64: 4, 18>}, {pipeline_mode = #tpu.pipeline_mode<synchronous>, transform_indices = @transform_2, window_bounds = array<i64: 8, 4>}, {pipeline_mode = #tpu.pipeline_mode<synchronous>, transform_indices = @transform_3, window_bounds = array<i64: 9, 256>}, {transform_indices = @transform_4, window_bounds = array<i64: 1, 8, 256>}, {transform_indices = @transform_5, window_bounds = array<i64: 1, 8, 1>}, {transform_indices = @transform_6, window_bounds = array<i64: 1, 8, 1>}]} {
    %c0 = arith.constant 0 : index
    %c0_0 = arith.constant 0 : index
    %c0_1 = arith.constant 0 : index
    %0 = vector.load %arg1[%c0, %c0_0, %c0_1] : memref<1x4x256xf32, #tpu.memory_space<vmem>>, vector<1x4x256xf32>
    %1 = vector.shape_cast %0 : vector<1x4x256xf32> to vector<4x256xf32>
    %cst = arith.constant 0.000000e+00 : f32
    %2 = vector.broadcast %cst : f32 to vector<4x256xf32>
    %3 = arith.maximumf %1, %2 : vector<4x256xf32>
    %c0_2 = arith.constant 0 : index
    %c0_3 = arith.constant 0 : index
    %4 = vector.load %arg4[%c0_2, %c0_3] : memref<9x256xf32, #tpu.memory_space<vmem>>, vector<1x256xf32>
    %5 = vector.shape_cast %4 : vector<1x256xf32> to vector<1x256xf32>
    %6 = vector.broadcast %5 : vector<1x256xf32> to vector<4x256xf32>
    %c1 = arith.constant 1 : index
    %c0_4 = arith.constant 0 : index
    %7 = vector.load %arg4[%c1, %c0_4] : memref<9x256xf32, #tpu.memory_space<vmem>>, vector<1x256xf32>
    %8 = vector.shape_cast %7 : vector<1x256xf32> to vector<1x256xf32>
    %9 = vector.broadcast %8 : vector<1x256xf32> to vector<4x256xf32>
    %c2 = arith.constant 2 : index
    %c0_5 = arith.constant 0 : index
    %10 = vector.load %arg4[%c2, %c0_5] : memref<9x256xf32, #tpu.memory_space<vmem>>, vector<1x256xf32>
    %11 = vector.shape_cast %10 : vector<1x256xf32> to vector<1x256xf32>
    %12 = vector.broadcast %11 : vector<1x256xf32> to vector<4x256xf32>
    %c3 = arith.constant 3 : index
    %c0_6 = arith.constant 0 : index
    %13 = vector.load %arg4[%c3, %c0_6] : memref<9x256xf32, #tpu.memory_space<vmem>>, vector<1x256xf32>
    %14 = vector.shape_cast %13 : vector<1x256xf32> to vector<1x256xf32>
    %15 = vector.broadcast %14 : vector<1x256xf32> to vector<4x256xf32>
    %c5 = arith.constant 5 : index
    %c0_7 = arith.constant 0 : index
    %16 = vector.load %arg4[%c5, %c0_7] : memref<9x256xf32, #tpu.memory_space<vmem>>, vector<1x256xf32>
    %17 = vector.shape_cast %16 : vector<1x256xf32> to vector<1x256xf32>
    %18 = vector.broadcast %17 : vector<1x256xf32> to vector<4x256xf32>
    %c6 = arith.constant 6 : index
    %c0_8 = arith.constant 0 : index
    %19 = vector.load %arg4[%c6, %c0_8] : memref<9x256xf32, #tpu.memory_space<vmem>>, vector<1x256xf32>
    %20 = vector.shape_cast %19 : vector<1x256xf32> to vector<1x256xf32>
    %21 = vector.broadcast %20 : vector<1x256xf32> to vector<4x256xf32>
    %c7 = arith.constant 7 : index
    %c0_9 = arith.constant 0 : index
    %22 = vector.load %arg4[%c7, %c0_9] : memref<9x256xf32, #tpu.memory_space<vmem>>, vector<1x256xf32>
    %23 = vector.shape_cast %22 : vector<1x256xf32> to vector<1x256xf32>
    %24 = vector.broadcast %23 : vector<1x256xf32> to vector<4x256xf32>
    %c8 = arith.constant 8 : index
    %c0_10 = arith.constant 0 : index
    %25 = vector.load %arg4[%c8, %c0_10] : memref<9x256xf32, #tpu.memory_space<vmem>>, vector<1x256xf32>
    %26 = vector.shape_cast %25 : vector<1x256xf32> to vector<1x256xf32>
    %27 = vector.broadcast %26 : vector<1x256xf32> to vector<4x256xf32>
    %c34_i32 = arith.constant 34 : i32
    %28 = tpu.dynamic_rotate %3 by %c34_i32 dim 1 : vector<4x256xf32>, i32 -> vector<4x256xf32>
    %c0_11 = arith.constant 0 : index
    %c0_12 = arith.constant 0 : index
    %29 = vector.load %arg2[%c0_11, %c0_12] : memref<4x18xf32, #tpu.memory_space<vmem>>, vector<4x1xf32>
    %30 = vector.broadcast %29 : vector<4x1xf32> to vector<4x256xf32>
    %31 = arith.mulf %28, %30 : vector<4x256xf32>
    %32 = arith.mulf %31, %6 : vector<4x256xf32>
    %c32_i32 = arith.constant 32 : i32
    %33 = tpu.dynamic_rotate %3 by %c32_i32 dim 1 : vector<4x256xf32>, i32 -> vector<4x256xf32>
    %c0_13 = arith.constant 0 : index
    %c1_14 = arith.constant 1 : index
    %34 = vector.load %arg2[%c0_13, %c1_14] : memref<4x18xf32, #tpu.memory_space<vmem>>, vector<4x1xf32>
    %35 = vector.broadcast %34 : vector<4x1xf32> to vector<4x256xf32>
    %36 = arith.mulf %33, %35 : vector<4x256xf32>
    %37 = arith.mulf %36, %9 : vector<4x256xf32>
    %38 = arith.addf %32, %37 : vector<4x256xf32>
    %c30_i32 = arith.constant 30 : i32
    %39 = tpu.dynamic_rotate %3 by %c30_i32 dim 1 : vector<4x256xf32>, i32 -> vector<4x256xf32>
    %c0_15 = arith.constant 0 : index
    %c2_16 = arith.constant 2 : index
    %40 = vector.load %arg2[%c0_15, %c2_16] : memref<4x18xf32, #tpu.memory_space<vmem>>, vector<4x1xf32>
    %41 = vector.broadcast %40 : vector<4x1xf32> to vector<4x256xf32>
    %42 = arith.mulf %39, %41 : vector<4x256xf32>
    %43 = arith.mulf %42, %12 : vector<4x256xf32>
    %44 = arith.addf %38, %43 : vector<4x256xf32>
    %c2_i32 = arith.constant 2 : i32
    %45 = tpu.dynamic_rotate %3 by %c2_i32 dim 1 : vector<4x256xf32>, i32 -> vector<4x256xf32>
    %c0_17 = arith.constant 0 : index
    %c3_18 = arith.constant 3 : index
    %46 = vector.load %arg2[%c0_17, %c3_18] : memref<4x18xf32, #tpu.memory_space<vmem>>, vector<4x1xf32>
    %47 = vector.broadcast %46 : vector<4x1xf32> to vector<4x256xf32>
    %48 = arith.mulf %45, %47 : vector<4x256xf32>
    %49 = arith.mulf %48, %15 : vector<4x256xf32>
    %50 = arith.addf %44, %49 : vector<4x256xf32>
    %c0_19 = arith.constant 0 : index
    %c4 = arith.constant 4 : index
    %51 = vector.load %arg2[%c0_19, %c4] : memref<4x18xf32, #tpu.memory_space<vmem>>, vector<4x1xf32>
    %52 = vector.broadcast %51 : vector<4x1xf32> to vector<4x256xf32>
    %53 = arith.mulf %3, %52 : vector<4x256xf32>
    %54 = arith.addf %50, %53 : vector<4x256xf32>
    %c254_i32 = arith.constant 254 : i32
    %55 = tpu.dynamic_rotate %3 by %c254_i32 dim 1 : vector<4x256xf32>, i32 -> vector<4x256xf32>
    %c0_20 = arith.constant 0 : index
    %c5_21 = arith.constant 5 : index
    %56 = vector.load %arg2[%c0_20, %c5_21] : memref<4x18xf32, #tpu.memory_space<vmem>>, vector<4x1xf32>
    %57 = vector.broadcast %56 : vector<4x1xf32> to vector<4x256xf32>
    %58 = arith.mulf %55, %57 : vector<4x256xf32>
    %59 = arith.mulf %58, %18 : vector<4x256xf32>
    %60 = arith.addf %54, %59 : vector<4x256xf32>
    %c226_i32 = arith.constant 226 : i32
    %61 = tpu.dynamic_rotate %3 by %c226_i32 dim 1 : vector<4x256xf32>, i32 -> vector<4x256xf32>
    %c0_22 = arith.constant 0 : index
    %c6_23 = arith.constant 6 : index
    %62 = vector.load %arg2[%c0_22, %c6_23] : memref<4x18xf32, #tpu.memory_space<vmem>>, vector<4x1xf32>
    %63 = vector.broadcast %62 : vector<4x1xf32> to vector<4x256xf32>
    %64 = arith.mulf %61, %63 : vector<4x256xf32>
    %65 = arith.mulf %64, %21 : vector<4x256xf32>
    %66 = arith.addf %60, %65 : vector<4x256xf32>
    %c224_i32 = arith.constant 224 : i32
    %67 = tpu.dynamic_rotate %3 by %c224_i32 dim 1 : vector<4x256xf32>, i32 -> vector<4x256xf32>
    %c0_24 = arith.constant 0 : index
    %c7_25 = arith.constant 7 : index
    %68 = vector.load %arg2[%c0_24, %c7_25] : memref<4x18xf32, #tpu.memory_space<vmem>>, vector<4x1xf32>
    %69 = vector.broadcast %68 : vector<4x1xf32> to vector<4x256xf32>
    %70 = arith.mulf %67, %69 : vector<4x256xf32>
    %71 = arith.mulf %70, %24 : vector<4x256xf32>
    %72 = arith.addf %66, %71 : vector<4x256xf32>
    %c222_i32 = arith.constant 222 : i32
    %73 = tpu.dynamic_rotate %3 by %c222_i32 dim 1 : vector<4x256xf32>, i32 -> vector<4x256xf32>
    %c0_26 = arith.constant 0 : index
    %c8_27 = arith.constant 8 : index
    %74 = vector.load %arg2[%c0_26, %c8_27] : memref<4x18xf32, #tpu.memory_space<vmem>>, vector<4x1xf32>
    %75 = vector.broadcast %74 : vector<4x1xf32> to vector<4x256xf32>
    %76 = arith.mulf %73, %75 : vector<4x256xf32>
    %77 = arith.mulf %76, %27 : vector<4x256xf32>
    %78 = arith.addf %72, %77 : vector<4x256xf32>
    %c34_i32_28 = arith.constant 34 : i32
    %79 = tpu.dynamic_rotate %78 by %c34_i32_28 dim 1 : vector<4x256xf32>, i32 -> vector<4x256xf32>
    %c0_29 = arith.constant 0 : index
    %c9 = arith.constant 9 : index
    %80 = vector.load %arg2[%c0_29, %c9] : memref<4x18xf32, #tpu.memory_space<vmem>>, vector<4x1xf32>
    %81 = vector.broadcast %80 : vector<4x1xf32> to vector<4x256xf32>
    %82 = arith.mulf %79, %81 : vector<4x256xf32>
    %83 = arith.mulf %82, %6 : vector<4x256xf32>
    %c32_i32_30 = arith.constant 32 : i32
    %84 = tpu.dynamic_rotate %78 by %c32_i32_30 dim 1 : vector<4x256xf32>, i32 -> vector<4x256xf32>
    %c0_31 = arith.constant 0 : index
    %c10 = arith.constant 10 : index
    %85 = vector.load %arg2[%c0_31, %c10] : memref<4x18xf32, #tpu.memory_space<vmem>>, vector<4x1xf32>
    %86 = vector.broadcast %85 : vector<4x1xf32> to vector<4x256xf32>
    %87 = arith.mulf %84, %86 : vector<4x256xf32>
    %88 = arith.mulf %87, %9 : vector<4x256xf32>
    %89 = arith.addf %83, %88 : vector<4x256xf32>
    %c30_i32_32 = arith.constant 30 : i32
    %90 = tpu.dynamic_rotate %78 by %c30_i32_32 dim 1 : vector<4x256xf32>, i32 -> vector<4x256xf32>
    %c0_33 = arith.constant 0 : index
    %c11 = arith.constant 11 : index
    %91 = vector.load %arg2[%c0_33, %c11] : memref<4x18xf32, #tpu.memory_space<vmem>>, vector<4x1xf32>
    %92 = vector.broadcast %91 : vector<4x1xf32> to vector<4x256xf32>
    %93 = arith.mulf %90, %92 : vector<4x256xf32>
    %94 = arith.mulf %93, %12 : vector<4x256xf32>
    %95 = arith.addf %89, %94 : vector<4x256xf32>
    %c2_i32_34 = arith.constant 2 : i32
    %96 = tpu.dynamic_rotate %78 by %c2_i32_34 dim 1 : vector<4x256xf32>, i32 -> vector<4x256xf32>
    %c0_35 = arith.constant 0 : index
    %c12 = arith.constant 12 : index
    %97 = vector.load %arg2[%c0_35, %c12] : memref<4x18xf32, #tpu.memory_space<vmem>>, vector<4x1xf32>
    %98 = vector.broadcast %97 : vector<4x1xf32> to vector<4x256xf32>
    %99 = arith.mulf %96, %98 : vector<4x256xf32>
    %100 = arith.mulf %99, %15 : vector<4x256xf32>
    %101 = arith.addf %95, %100 : vector<4x256xf32>
    %c0_36 = arith.constant 0 : index
    %c13 = arith.constant 13 : index
    %102 = vector.load %arg2[%c0_36, %c13] : memref<4x18xf32, #tpu.memory_space<vmem>>, vector<4x1xf32>
    %103 = vector.broadcast %102 : vector<4x1xf32> to vector<4x256xf32>
    %104 = arith.mulf %78, %103 : vector<4x256xf32>
    %105 = arith.addf %101, %104 : vector<4x256xf32>
    %c254_i32_37 = arith.constant 254 : i32
    %106 = tpu.dynamic_rotate %78 by %c254_i32_37 dim 1 : vector<4x256xf32>, i32 -> vector<4x256xf32>
    %c0_38 = arith.constant 0 : index
    %c14 = arith.constant 14 : index
    %107 = vector.load %arg2[%c0_38, %c14] : memref<4x18xf32, #tpu.memory_space<vmem>>, vector<4x1xf32>
    %108 = vector.broadcast %107 : vector<4x1xf32> to vector<4x256xf32>
    %109 = arith.mulf %106, %108 : vector<4x256xf32>
    %110 = arith.mulf %109, %18 : vector<4x256xf32>
    %111 = arith.addf %105, %110 : vector<4x256xf32>
    %c226_i32_39 = arith.constant 226 : i32
    %112 = tpu.dynamic_rotate %78 by %c226_i32_39 dim 1 : vector<4x256xf32>, i32 -> vector<4x256xf32>
    %c0_40 = arith.constant 0 : index
    %c15 = arith.constant 15 : index
    %113 = vector.load %arg2[%c0_40, %c15] : memref<4x18xf32, #tpu.memory_space<vmem>>, vector<4x1xf32>
    %114 = vector.broadcast %113 : vector<4x1xf32> to vector<4x256xf32>
    %115 = arith.mulf %112, %114 : vector<4x256xf32>
    %116 = arith.mulf %115, %21 : vector<4x256xf32>
    %117 = arith.addf %111, %116 : vector<4x256xf32>
    %c224_i32_41 = arith.constant 224 : i32
    %118 = tpu.dynamic_rotate %78 by %c224_i32_41 dim 1 : vector<4x256xf32>, i32 -> vector<4x256xf32>
    %c0_42 = arith.constant 0 : index
    %c16 = arith.constant 16 : index
    %119 = vector.load %arg2[%c0_42, %c16] : memref<4x18xf32, #tpu.memory_space<vmem>>, vector<4x1xf32>
    %120 = vector.broadcast %119 : vector<4x1xf32> to vector<4x256xf32>
    %121 = arith.mulf %118, %120 : vector<4x256xf32>
    %122 = arith.mulf %121, %24 : vector<4x256xf32>
    %123 = arith.addf %117, %122 : vector<4x256xf32>
    %c222_i32_43 = arith.constant 222 : i32
    %124 = tpu.dynamic_rotate %78 by %c222_i32_43 dim 1 : vector<4x256xf32>, i32 -> vector<4x256xf32>
    %c0_44 = arith.constant 0 : index
    %c17 = arith.constant 17 : index
    %125 = vector.load %arg2[%c0_44, %c17] : memref<4x18xf32, #tpu.memory_space<vmem>>, vector<4x1xf32>
    %126 = vector.broadcast %125 : vector<4x1xf32> to vector<4x256xf32>
    %127 = arith.mulf %124, %126 : vector<4x256xf32>
    %128 = arith.mulf %127, %27 : vector<4x256xf32>
    %129 = arith.addf %123, %128 : vector<4x256xf32>
    %130 = vector.extract_strided_slice %129 {offsets = [0, 0], sizes = [1, 256], strides = [1, 1]} : vector<4x256xf32> to vector<1x256xf32>
    %c0_45 = arith.constant 0 : index
    %c0_46 = arith.constant 0 : index
    %131 = vector.load %arg3[%c0_45, %c0_46] : memref<8x4xf32, #tpu.memory_space<vmem>>, vector<8x1xf32>
    %132 = vector.broadcast %130 : vector<1x256xf32> to vector<8x256xf32>
    %133 = vector.broadcast %131 : vector<8x1xf32> to vector<8x256xf32>
    %134 = arith.mulf %132, %133 : vector<8x256xf32>
    %135 = vector.extract_strided_slice %129 {offsets = [1, 0], sizes = [1, 256], strides = [1, 1]} : vector<4x256xf32> to vector<1x256xf32>
    %c0_47 = arith.constant 0 : index
    %c1_48 = arith.constant 1 : index
    %136 = vector.load %arg3[%c0_47, %c1_48] : memref<8x4xf32, #tpu.memory_space<vmem>>, vector<8x1xf32>
    %137 = vector.broadcast %135 : vector<1x256xf32> to vector<8x256xf32>
    %138 = vector.broadcast %136 : vector<8x1xf32> to vector<8x256xf32>
    %139 = arith.mulf %137, %138 : vector<8x256xf32>
    %140 = arith.addf %134, %139 : vector<8x256xf32>
    %141 = vector.extract_strided_slice %129 {offsets = [2, 0], sizes = [1, 256], strides = [1, 1]} : vector<4x256xf32> to vector<1x256xf32>
    %c0_49 = arith.constant 0 : index
    %c2_50 = arith.constant 2 : index
    %142 = vector.load %arg3[%c0_49, %c2_50] : memref<8x4xf32, #tpu.memory_space<vmem>>, vector<8x1xf32>
    %143 = vector.broadcast %141 : vector<1x256xf32> to vector<8x256xf32>
    %144 = vector.broadcast %142 : vector<8x1xf32> to vector<8x256xf32>
    %145 = arith.mulf %143, %144 : vector<8x256xf32>
    %146 = arith.addf %140, %145 : vector<8x256xf32>
    %147 = vector.extract_strided_slice %129 {offsets = [3, 0], sizes = [1, 256], strides = [1, 1]} : vector<4x256xf32> to vector<1x256xf32>
    %c0_51 = arith.constant 0 : index
    %c3_52 = arith.constant 3 : index
    %148 = vector.load %arg3[%c0_51, %c3_52] : memref<8x4xf32, #tpu.memory_space<vmem>>, vector<8x1xf32>
    %149 = vector.broadcast %147 : vector<1x256xf32> to vector<8x256xf32>
    %150 = vector.broadcast %148 : vector<8x1xf32> to vector<8x256xf32>
    %151 = arith.mulf %149, %150 : vector<8x256xf32>
    %152 = arith.addf %146, %151 : vector<8x256xf32>
    %c0_53 = arith.constant 0 : index
    %c0_54 = arith.constant 0 : index
    %c0_55 = arith.constant 0 : index
    %153 = vector.load %arg5[%c0_53, %c0_54, %c0_55] : memref<1x8x256xf32, #tpu.memory_space<vmem>>, vector<1x8x256xf32>
    %154 = vector.shape_cast %153 : vector<1x8x256xf32> to vector<8x256xf32>
    %155 = vector.shape_cast %152 : vector<8x256xf32> to vector<1x8x256xf32>
    tpu.vector_store %arg5[%c0_53, %c0_54, %c0_55], %155 {strides = array<i32>} : memref<1x8x256xf32, #tpu.memory_space<vmem>>, vector<1x8x256xf32>,
    %cst_56 = arith.constant dense<0.000000e+00> : vector<8xf32>
    %156 = vector.multi_reduction <add>, %152, %cst_56 [1] : vector<8x256xf32> to vector<8xf32>
    %157 = vector.shape_cast %156 : vector<8xf32> to vector<8x1xf32>
    %c0_57 = arith.constant 0 : index
    %c0_58 = arith.constant 0 : index
    %c0_59 = arith.constant 0 : index
    %158 = vector.load %arg6[%c0_57, %c0_58, %c0_59] : memref<1x8x1xf32, #tpu.memory_space<vmem>>, vector<1x8x1xf32>
    %159 = vector.shape_cast %158 : vector<1x8x1xf32> to vector<8x1xf32>
    %160 = vector.shape_cast %157 : vector<8x1xf32> to vector<1x8x1xf32>
    tpu.vector_store %arg6[%c0_57, %c0_58, %c0_59], %160 {strides = array<i32>} : memref<1x8x1xf32, #tpu.memory_space<vmem>>, vector<1x8x1xf32>,
    %161 = arith.mulf %152, %152 : vector<8x256xf32>
    %cst_60 = arith.constant dense<0.000000e+00> : vector<8xf32>
    %162 = vector.multi_reduction <add>, %161, %cst_60 [1] : vector<8x256xf32> to vector<8xf32>
    %163 = vector.shape_cast %162 : vector<8xf32> to vector<8x1xf32>
    %c0_61 = arith.constant 0 : index
    %c0_62 = arith.constant 0 : index
    %c0_63 = arith.constant 0 : index
    %164 = vector.load %arg7[%c0_61, %c0_62, %c0_63] : memref<1x8x1xf32, #tpu.memory_space<vmem>>, vector<1x8x1xf32>
    %165 = vector.shape_cast %164 : vector<1x8x1xf32> to vector<8x1xf32>
    %166 = vector.shape_cast %163 : vector<8x1xf32> to vector<1x8x1xf32>
    tpu.vector_store %arg7[%c0_61, %c0_62, %c0_63], %166 {strides = array<i32>} : memref<1x8x1xf32, #tpu.memory_space<vmem>>, vector<1x8x1xf32>,
    return
  }
  func.func @transform_0(%arg0: i32) -> (i32, i32, i32) {
    %c0_i32 = arith.constant 0 : i32
    %c0_i32_0 = arith.constant 0 : i32
    %c0_i32_1 = arith.constant 0 : i32
    return %arg0, %c0_i32, %c0_i32_0 : i32, i32, i32
  }
  func.func @transform_1(%arg0: i32) -> (i32, i32) {
    %c0_i32 = arith.constant 0 : i32
    %c0_i32_0 = arith.constant 0 : i32
    %c0_i32_1 = arith.constant 0 : i32
    return %c0_i32, %c0_i32_0 : i32, i32
  }
  func.func @transform_2(%arg0: i32) -> (i32, i32) {
    %c0_i32 = arith.constant 0 : i32
    %c0_i32_0 = arith.constant 0 : i32
    %c0_i32_1 = arith.constant 0 : i32
    return %c0_i32, %c0_i32_0 : i32, i32
  }
  func.func @transform_3(%arg0: i32) -> (i32, i32) {
    %c0_i32 = arith.constant 0 : i32
    %c0_i32_0 = arith.constant 0 : i32
    %c0_i32_1 = arith.constant 0 : i32
    return %c0_i32, %c0_i32_0 : i32, i32
  }
  func.func @transform_4(%arg0: i32) -> (i32, i32, i32) {
    %c0_i32 = arith.constant 0 : i32
    %c0_i32_0 = arith.constant 0 : i32
    %c0_i32_1 = arith.constant 0 : i32
    return %arg0, %c0_i32, %c0_i32_0 : i32, i32, i32
  }
  func.func @transform_5(%arg0: i32) -> (i32, i32, i32) {
    %c0_i32 = arith.constant 0 : i32
    %c0_i32_0 = arith.constant 0 : i32
    %c0_i32_1 = arith.constant 0 : i32
    return %arg0, %c0_i32, %c0_i32_0 : i32, i32, i32
  }
  func.func @transform_6(%arg0: i32) -> (i32, i32, i32) {
    %c0_i32 = arith.constant 0 : i32
    %c0_i32_0 = arith.constant 0 : i32
    %c0_i32_1 = arith.constant 0 : i32
    return %arg0, %c0_i32, %c0_i32_0 : i32, i32, i32
  }
}

</mosaic_0001>

<llo_original>
// kernel: tpu_custom_call.1
$region0: #{tpu_custom_call.1}
  #allocation0 [shape = 'u32[]', space=smem, size = 0x4, offset = 0x4, fixed_abs, tag = 'smem constant byte address 0x4 - core index']
  #allocation1 [shape = 'u32[144,128]{1,0:T(1,128)}', space=vmem, size = 0x12000, scoped, tag = 'internal scratch']
  %s0 = inlined_call_operand.hbm [shape: f32[2,4,256], index: 0, kind: input, shape index: {}]
  %s1 = inlined_call_operand.vmem [shape: f32[4,18], index: 1, kind: input, shape index: {}]
  %s2 = inlined_call_operand.vmem [shape: f32[8,4], index: 2, kind: input, shape index: {}]
  %s3 = inlined_call_operand.hbm [shape: f32[9,256], index: 3, kind: input, shape index: {}]
  %s4 = inlined_call_operand.hbm [shape: f32[2,8,256], index: 4, kind: output, shape index: {0}]
  %s5 = inlined_call_operand.vmem [shape: f32[2,8,1], index: 5, kind: output, shape index: {1}]
  %s6 = inlined_call_operand.vmem [shape: f32[2,8,1], index: 6, kind: output, shape index: {2}]
  %7 = xla_tuple %s4, %s5, %s6
  %s8 = sld [smem:[#allocation0]]
  $region73: #{tpu_custom_call.1} parent=0
    _
  %s10 = ssub.s32 1, %s8
  %s11 = scalar_select 0, %s10, %s8
  $region1: #{tpu_custom_call.1} parent=0
    #allocation2 [shape = 'u8[8192]{0}', space=vmem, size = 0x2000, scoped, tag = 'input window, operand 0']
    #allocation3 [shape = 's32[2]{0}', space=sflag, size = 0x8, scoped, tag = 'scoped memory for tpu_custom_call.1']
    #allocation4 [shape = 's32[2]{0}', space=sflag, size = 0x8, scoped, tag = 'scoped memory for tpu_custom_call.1']
    #allocation5 [shape = 'u8[16384]{0}', space=vmem, size = 0x4000, scoped, tag = 'input window, operand 3, single buffered']
    #allocation6 [shape = 's32[1]{0}', space=sflag, size = 0x4, scoped, tag = 'scoped memory for tpu_custom_call.1']
    #allocation7 [shape = 'u8[16384]{0}', space=vmem, size = 0x4000, scoped, tag = 'output window, operand 0']
    %12 = vsyncpa [#allocation3], 0
    %s13 = scalar_lea.sflag [#allocation3], 1
    %14 = vsyncpa %s13, 0
    %15 = vsyncpa [#allocation6], 0
    %16 = vsyncpa [#allocation4], 0
    %s17 = scalar_lea.sflag [#allocation4], 1
    %18 = vsyncpa %s17, 0
    loop: start=0, step=1, limit=4
    $region2: #{tpu_custom_call.1} parent=1 // loop_pre_header
      _
    $region3: #{tpu_custom_call.1} parent=1 // loop_header
      %s20 = sphi 0, %s24
      %p21 = scmp.ge.s32.totalorder %s20, 4
      %s30 = sphi 0, %s32
      %s33 = sphi 0, %s30
      %s34 = sphi 0, %s33
      %s50 = sphi 0, %s34
      %s54 = sphi 0, %s54
      %s56 = sphi 0, %s54
      %s57 = sphi 0, %s56
      %s71 = sphi 0, %s57
      %s75 = sphi 0, %s75
      %s77 = sphi 0, %s75
      %s78 = sphi 0, %s77
      %s92 = sphi 0, %s78
      %s96 = sphi 0, %s96
      %s98 = sphi 0, %s96
      %s99 = sphi 0, %s98
      %s113 = sphi 0, %s99
      %s119 = sphi 0, %s121
      %s122 = sphi 0, %s119
      %s123 = sphi 0, %s122
      %s139 = sphi 0, %s123
      %s145 = sphi 0, %s147
      %s148 = sphi 0, %s145
      %s149 = sphi 0, %s148
      %s165 = sphi 0, %s149
      %s171 = sphi 0, %s173
      %s174 = sphi 0, %s171
      %s175 = sphi 0, %s174
      %s191 = sphi 0, %s175
    $region4: #{tpu_custom_call.1} parent=1 // loop_header_branch
      %23 = sbr.rel (%p21) target = $region8
    $region5: #{tpu_custom_call.1} parent=1 // loop_body
      %s25 = ssub.s32 %s20, 1
      %s26 = ssub.s32 %s20, 2
      %s27 = sadd.s32 %s20, 1
      %s28 = ssub.s32 %s20, %s27
      %p29 = scmp.eq.s32.totalorder %s28, 0
      %s31 = sadd.s32 %s30, 1
      %s32 = scalar_select %p29, %s30, %s31
      %p35 = pneg %p29
      %p36 = scmp.eq.s32.totalorder %s20, 1
      %p37 = por %p35, %p36
      %p38 = scmp.ne.s32.totalorder %s30, %s33
      %p39 = scmp.eq.s32.totalorder %s20, 0
      %p40 = por %p38, %p39
      %p41 = scmp.ne.s32.totalorder %s30, %s33
      %p42 = scmp.eq.s32.totalorder %s25, 1
      %p43 = por %p41, %p42
      %p44 = scmp.ne.s32.totalorder %s33, %s34
      %p45 = scmp.eq.s32.totalorder %s25, 0
      %p46 = por %p44, %p45
      %p47 = scmp.ne.s32.totalorder %s33, %s34
      %p48 = scmp.eq.s32.totalorder %s26, 1
      %p49 = por %p47, %p48
      %p51 = scmp.ne.s32.totalorder %s34, %s50
      %p52 = scmp.eq.s32.totalorder %s26, 0
      %p53 = por %p51, %p52
      %s55 = sadd.s32 %s54, 1
      %p58 = scmp.eq.s32.totalorder %s20, 1
      %p59 = scmp.ne.s32.totalorder %s54, %s56
      %p60 = scmp.eq.s32.totalorder %s20, 0
      %p61 = por %p59, %p60
      %p62 = scmp.ne.s32.totalorder %s54, %s56
      %p63 = scmp.eq.s32.totalorder %s25, 1
      %p64 = por %p62, %p63
      %p65 = scmp.ne.s32.totalorder %s56, %s57
      %p66 = scmp.eq.s32.totalorder %s25, 0
      %p67 = por %p65, %p66
      %p68 = scmp.ne.s32.totalorder %s56, %s57
      %p69 = scmp.eq.s32.totalorder %s26, 1
      %p70 = por %p68, %p69
      %p72 = scmp.ne.s32.totalorder %s57, %s71
      %p73 = scmp.eq.s32.totalorder %s26, 0
      %p74 = por %p72, %p73
      %s76 = sadd.s32 %s75, 1
      %p79 = scmp.eq.s32.totalorder %s20, 1
      %p80 = scmp.ne.s32.totalorder %s75, %s77
      %p81 = scmp.eq.s32.totalorder %s20, 0
      %p82 = por %p80, %p81
      %p83 = scmp.ne.s32.totalorder %s75, %s77
      %p84 = scmp.eq.s32.totalorder %s25, 1
      %p85 = por %p83, %p84
      %p86 = scmp.ne.s32.totalorder %s77, %s78
      %p87 = scmp.eq.s32.totalorder %s25, 0
      %p88 = por %p86, %p87
      %p89 = scmp.ne.s32.totalorder %s77, %s78
      %p90 = scmp.eq.s32.totalorder %s26, 1
      %p91 = por %p89, %p90
      %p93 = scmp.ne.s32.totalorder %s78, %s92
      %p94 = scmp.eq.s32.totalorder %s26, 0
      %p95 = por %p93, %p94
      %s97 = sadd.s32 %s96, 1
      %p100 = scmp.eq.s32.totalorder %s20, 1
      %p101 = scmp.ne.s32.totalorder %s96, %s98
      %p102 = scmp.eq.s32.totalorder %s20, 0
      %p103 = por %p101, %p102
      %p104 = scmp.ne.s32.totalorder %s96, %s98
      %p105 = scmp.eq.s32.totalorder %s25, 1
      %p106 = por %p104, %p105
      %p107 = scmp.ne.s32.totalorder %s98, %s99
      %p108 = scmp.eq.s32.totalorder %s25, 0
      %p109 = por %p107, %p108
      %p110 = scmp.ne.s32.totalorder %s98, %s99
      %p111 = scmp.eq.s32.totalorder %s26, 1
      %p112 = por %p110, %p111
      %p114 = scmp.ne.s32.totalorder %s99, %s113
      %p115 = scmp.eq.s32.totalorder %s26, 0
      %p116 = por %p114, %p115
      %s117 = ssub.s32 %s20, %s27
      %p118 = scmp.eq.s32.totalorder %s117, 0
      %s120 = sadd.s32 %s119, 1
      %s121 = scalar_select %p118, %s119, %s120
      %p124 = pneg %p118
      %p125 = scmp.eq.s32.totalorder %s20, 1
      %p126 = por %p124, %p125
      %p127 = scmp.ne.s32.totalorder %s119, %s122
      %p128 = scmp.eq.s32.totalorder %s20, 0
      %p129 = por %p127, %p128
      %p130 = scmp.ne.s32.totalorder %s119, %s122
      %p131 = scmp.eq.s32.totalorder %s25, 1
      %p132 = por %p130, %p131
      %p133 = scmp.ne.s32.totalorder %s122, %s123
      %p134 = scmp.eq.s32.totalorder %s25, 0
      %p135 = por %p133, %p134
      %p136 = scmp.ne.s32.totalorder %s122, %s123
      %p137 = scmp.eq.s32.totalorder %s26, 1
      %p138 = por %p136, %p137
      %p140 = scmp.ne.s32.totalorder %s123, %s139
      %p141 = scmp.eq.s32.totalorder %s26, 0
      %p142 = por %p140, %p141
      %s143 = ssub.s32 %s20, %s27
      %p144 = scmp.eq.s32.totalorder %s143, 0
      %s146 = sadd.s32 %s145, 1
      %s147 = scalar_select %p144, %s145, %s146
      %p150 = pneg %p144
      %p151 = scmp.eq.s32.totalorder %s20, 1
      %p152 = por %p150, %p151
      %p153 = scmp.ne.s32.totalorder %s145, %s148
      %p154 = scmp.eq.s32.totalorder %s20, 0
      %p155 = por %p153, %p154
      %p156 = scmp.ne.s32.totalorder %s145, %s148
      %p157 = scmp.eq.s32.totalorder %s25, 1
      %p158 = por %p156, %p157
      %p159 = scmp.ne.s32.totalorder %s148, %s149
      %p160 = scmp.eq.s32.totalorder %s25, 0
      %p161 = por %p159, %p160
      %p162 = scmp.ne.s32.totalorder %s148, %s149
      %p163 = scmp.eq.s32.totalorder %s26, 1
      %p164 = por %p162, %p163
      %p166 = scmp.ne.s32.totalorder %s149, %s165
      %p167 = scmp.eq.s32.totalorder %s26, 0
      %p168 = por %p166, %p167
      %s169 = ssub.s32 %s20, %s27
      %p170 = scmp.eq.s32.totalorder %s169, 0
      %s172 = sadd.s32 %s171, 1
      %s173 = scalar_select %p170, %s171, %s172
      %p176 = pneg %p170
      %p177 = scmp.eq.s32.totalorder %s20, 1
      %p178 = por %p176, %p177
      %p179 = scmp.ne.s32.totalorder %s171, %s174
      %p180 = scmp.eq.s32.totalorder %s20, 0
      %p181 = por %p179, %p180
      %p182 = scmp.ne.s32.totalorder %s171, %s174
      %p183 = scmp.eq.s32.totalorder %s25, 1
      %p184 = por %p182, %p183
      %p185 = scmp.ne.s32.totalorder %s174, %s175
      %p186 = scmp.eq.s32.totalorder %s25, 0
      %p187 = por %p185, %p186
      %p188 = scmp.ne.s32.totalorder %s174, %s175
      %p189 = scmp.eq.s32.totalorder %s26, 1
      %p190 = por %p188, %p189
      %p192 = scmp.ne.s32.totalorder %s175, %s191
      %p193 = scmp.eq.s32.totalorder %s26, 0
      %p194 = por %p192, %p193
      %p195 = scmp.le.s32.totalorder 1, %s20
      %p196 = scmp.lt.s32.totalorder %s20, 3
      %p197 = pnand %p195, %p196
      %p198 = pneg %p197
      // Predicated region
      $region9: #{tpu_custom_call.1} parent=5 // pred_check
        _
      $region10: #{tpu_custom_call.1} parent=5 // pred_check_branch
        %200 = sbr.rel (%p197) target = $region12
      $region11: #{tpu_custom_call.1} parent=5 // pred_region
        %s201 = ssub.s32 %s20, 1
        // Predicated region
        $region13: #{tpu_custom_call.1} parent=11 // pred_check
          %p202 = pneg %p67
        $region14: #{tpu_custom_call.1} parent=11 // pred_check_branch
          %204 = sbr.rel (%p202) target = $region16
        $region15: #{tpu_custom_call.1} parent=11 // pred_region
          _
        $region16: #{tpu_custom_call.1} parent=11 // pred_fallthru
          _
        // Predicated region
        $region17: #{tpu_custom_call.1} parent=11 // pred_check
          %p205 = pneg %p88
        $region18: #{tpu_custom_call.1} parent=11 // pred_check_branch
          %207 = sbr.rel (%p205) target = $region20
        $region19: #{tpu_custom_call.1} parent=11 // pred_region
          _
        $region20: #{tpu_custom_call.1} parent=11 // pred_fallthru
          _
        // Predicated region
        $region21: #{tpu_custom_call.1} parent=11 // pred_check
          %p208 = pneg %p109
        $region22: #{tpu_custom_call.1} parent=11 // pred_check_branch
          %210 = sbr.rel (%p208) target = $region24
        $region23: #{tpu_custom_call.1} parent=11 // pred_region
          %s212 = ssub.s32 512, 512
          %213 = vsyncadd [#allocation6], %s212
          %s214 = sshll.u32 [#allocation5], 4
          %s215 = int_to_ptr.vmem [resolvable:$true] %s214
          %220 = dma.hbm_to_vmem [thread:$0]  %s3, 512, %s215, [#allocation6], 256, 256, 16
        $region24: #{tpu_custom_call.1} parent=11 // pred_fallthru
          _
      $region12: #{tpu_custom_call.1} parent=5 // pred_fallthru
        _
      %p221 = scmp.lt.s32.totalorder %s20, 2
      // Predicated region
      $region25: #{tpu_custom_call.1} parent=5 // pred_check
        %p222 = pneg %p221
      $region26: #{tpu_custom_call.1} parent=5 // pred_check_branch
        %224 = sbr.rel (%p222) target = $region28
      $region27: #{tpu_custom_call.1} parent=5 // pred_region
        // Predicated region
        $region29: #{tpu_custom_call.1} parent=27 // pred_check
          %p225 = pneg %p40
        $region30: #{tpu_custom_call.1} parent=27 // pred_check_branch
          %227 = sbr.rel (%p225) target = $region32
        $region31: #{tpu_custom_call.1} parent=27 // pred_region
          %s228 = sand.u32 %s30, 1
          %s229 = scalar_lea.sflag [#allocation3], %s228
          %s230 = sand.u32 %s30, 1
          %s231 = smul.addr %s230, 8
          %s232 = scalar_lea.vmem [#allocation2], %s231
          %s234 = ssub.s32 128, 128
          %235 = vsyncadd %s229, %s234
          %s236 = smul.addr %s20, 2
          %s237 = smul.addr %s236, 64
          %s238 = scalar_lea.hbm %s0, %s237
          %s240 = sshll.u32 %s232, 4
          %s241 = int_to_ptr.vmem [resolvable:$true] %s240
          %243 = dma.hbm_to_vmem [thread:$0]  %s238, 128, %s241, %s229
        $region32: #{tpu_custom_call.1} parent=27 // pred_fallthru
          _
      $region28: #{tpu_custom_call.1} parent=5 // pred_fallthru
        _
      %p244 = scmp.le.s32.totalorder 1, %s20
      %p245 = scmp.lt.s32.totalorder %s20, 3
      %p246 = pnand %p244, %p245
      %p247 = pneg %p246
      // Predicated region
      $region33: #{tpu_custom_call.1} parent=5 // pred_check
        _
      $region34: #{tpu_custom_call.1} parent=5 // pred_check_branch
        %249 = sbr.rel (%p246) target = $region36
      $region35: #{tpu_custom_call.1} parent=5 // pred_region
        %s250 = ssub.s32 %s20, 1
        %s251 = sand.u32 %s33, 1
        %s252 = scalar_lea.sflag [#allocation3], %s251
        %s253 = sand.u32 %s33, 1
        %s254 = smul.addr %s253, 8
        %s255 = scalar_lea.vmem [#allocation2], %s254
        // Predicated region
        $region37: #{tpu_custom_call.1} parent=35 // pred_check
          %p256 = pneg %p46
        $region38: #{tpu_custom_call.1} parent=35 // pred_check_branch
          %258 = sbr.rel (%p256) target = $region40
        $region39: #{tpu_custom_call.1} parent=35 // pred_region
          %259 = dma.done %s252, 128
        $region40: #{tpu_custom_call.1} parent=35 // pred_fallthru
          _
        // Predicated region
        $region41: #{tpu_custom_call.1} parent=35 // pred_check
          %p260 = pneg %p109
        $region42: #{tpu_custom_call.1} parent=35 // pred_check_branch
          %262 = sbr.rel (%p260) target = $region44
        $region43: #{tpu_custom_call.1} parent=35 // pred_region
          %263 = dma.done [#allocation6], 512
        $region44: #{tpu_custom_call.1} parent=35 // pred_fallthru
          _
        %s264 = sand.u32 %s33, 1
        %s265 = scalar_lea.sflag [#allocation3], %s264
        %s266 = sand.u32 %s33, 1
        %s267 = smul.addr %s266, 8
        %s268 = scalar_lea.vmem [#allocation2], %s267
        %p269 = pneg %p46
        %p270 = pneg %p43
        %p271 = pneg %p67
        %p272 = pneg %p64
        %p273 = pneg %p88
        %p274 = pneg %p85
        %p275 = pneg %p109
        %p276 = pneg %p106
        %p277 = pneg %p135
        %p278 = pneg %p132
        %s279 = sand.u32 %s122, 1
        %s280 = scalar_lea.sflag [#allocation4], %s279
        %s281 = sand.u32 %s122, 1
        %s282 = smul.addr %s281, 16
        %s283 = scalar_lea.vmem [#allocation7], %s282
        %p284 = pneg %p161
        %p285 = pneg %p158
        %p286 = scmp.lt.s32.totalorder %s25, 1
        %s287 = scalar_select %p286, %s25, 1
        %s288 = smul.addr %s287, 8
        %s289 = scalar_lea.vmem %s5, %s288
        %p290 = pneg %p187
        %p291 = pneg %p184
        %p292 = scmp.lt.s32.totalorder %s25, 1
        %s293 = scalar_select %p292, %s25, 1
        %s294 = smul.addr %s293, 8
        %s295 = scalar_lea.vmem %s6, %s294
        %p296 = scmp.lt.s32.totalorder %s25, 1
        %s297 = scalar_select %p296, %s25, 1
        %s298 = smul.addr %s297, 8
        %s299 = scalar_lea.vmem %s5, %s298
        %p300 = scmp.lt.s32.totalorder %s25, 1
        %s301 = scalar_select %p300, %s25, 1
        %s302 = smul.addr %s301, 8
        %s303 = scalar_lea.vmem %s6, %s302
        %v304 = vld [vmem:[%s255] sm:$0xff]
        %v305 = vmax.f32 %v304, 0.0
        %v306 = vld [vmem:[#allocation5] ss:$8 sm:$0x3]
        %v308 = vlaneseq
        %v309 = vshrl.u32 %v308, 7
        %v310 = vsub.s32 0, %v309
        %v311 = vrot.slane %v306, %v310
        %v312 = vlaneseq
        %v313 = vshrl.u32 %v312, 7
        %v314 = vsub.s32 1, %v313
        %v315 = vrot.slane %v306, %v314
        %s318 = scalar_lea.vmem [#allocation5], 1
        %v319 = vld [vmem:[%s318] ss:$8 sm:$0x3]
        %v321 = vlaneseq
        %v322 = vshrl.u32 %v321, 7
        %v323 = vsub.s32 0, %v322
        %v324 = vrot.slane %v319, %v323
        %v325 = vlaneseq
        %v326 = vshrl.u32 %v325, 7
        %v327 = vsub.s32 1, %v326
        %v328 = vrot.slane %v319, %v327
        %s331 = scalar_lea.vmem [#allocation5], 2
        %v332 = vld [vmem:[%s331] ss:$8 sm:$0x3]
        %v334 = vlaneseq
        %v335 = vshrl.u32 %v334, 7
        %v336 = vsub.s32 0, %v335
        %v337 = vrot.slane %v332, %v336
        %v338 = vlaneseq
        %v339 = vshrl.u32 %v338, 7
        %v340 = vsub.s32 1, %v339
        %v341 = vrot.slane %v332, %v340
        %s344 = scalar_lea.vmem [#allocation5], 3
        %v345 = vld [vmem:[%s344] ss:$8 sm:$0x3]
        %v347 = vlaneseq
        %v348 = vshrl.u32 %v347, 7
        %v349 = vsub.s32 0, %v348
        %v350 = vrot.slane %v345, %v349
        %v351 = vlaneseq
        %v352 = vshrl.u32 %v351, 7
        %v353 = vsub.s32 1, %v352
        %v354 = vrot.slane %v345, %v353
        %s357 = scalar_lea.vmem [#allocation5], 5
        %v358 = vld [vmem:[%s357] ss:$8 sm:$0x3]
        %v360 = vlaneseq
        %v361 = vshrl.u32 %v360, 7
        %v362 = vsub.s32 0, %v361
        %v363 = vrot.slane %v358, %v362
        %v364 = vlaneseq
        %v365 = vshrl.u32 %v364, 7
        %v366 = vsub.s32 1, %v365
        %v367 = vrot.slane %v358, %v366
        %s370 = scalar_lea.vmem [#allocation5], 6
        %v371 = vld [vmem:[%s370] ss:$8 sm:$0x3]
        %v373 = vlaneseq
        %v374 = vshrl.u32 %v373, 7
        %v375 = vsub.s32 0, %v374
        %v376 = vrot.slane %v371, %v375
        %v377 = vlaneseq
        %v378 = vshrl.u32 %v377, 7
        %v379 = vsub.s32 1, %v378
        %v380 = vrot.slane %v371, %v379
        %s383 = scalar_lea.vmem [#allocation5], 7
        %v384 = vld [vmem:[%s383] ss:$8 sm:$0x3]
        %v386 = vlaneseq
        %v387 = vshrl.u32 %v386, 7
        %v388 = vsub.s32 0, %v387
        %v389 = vrot.slane %v384, %v388
        %v390 = vlaneseq
        %v391 = vshrl.u32 %v390, 7
        %v392 = vsub.s32 1, %v391
        %v393 = vrot.slane %v384, %v392
        %s396 = scalar_lea.vmem [#allocation5], 16
        %v397 = vld [vmem:[%s396] ss:$8 sm:$0x3]
        %v399 = vlaneseq
        %v400 = vshrl.u32 %v399, 7
        %v401 = vsub.s32 0, %v400
        %v402 = vrot.slane %v397, %v401
        %v403 = vlaneseq
        %v404 = vshrl.u32 %v403, 7
        %v405 = vsub.s32 1, %v404
        %v406 = vrot.slane %v397, %v405
        %v410 = vcombine.high %v305, %v305
        %412 = vrot.lane.b32.xlu0 %v305, 34
        %v413 = vpop.permute.xlu0 %412
        %414 = vrot.lane.b32.xlu0 %v410, 34
        %v415 = vpop.permute.xlu0 %414
        %v416 = vlaneseq
        %v417 = vand.u32 %v416, 127
        %vm418 = vcmp.lt.s32.totalorder %v417, 34
        %v419 = vsel %vm418, %v413, %v415
        %v420 = vsel %vm418, %v415, %v413
        %v421 = vld [vmem:[%s1] sm:$0xf]
        %423 = vset.pattern.permute.xlu0 0
        %424 = vperm.xlu0 %423, %v421
        %v425 = vpop.permute.xlu0 %424
        %v427 = vmul.f32 %v420, %v425
        %v428 = vmul.f32 %v419, %v425
        %v429 = vmul.f32 %v427, %v311
        %v430 = vmul.f32 %v428, %v315
        %431 = vrot.lane.b32.xlu0 %v305, 32
        %v432 = vpop.permute.xlu0 %431
        %433 = vrot.lane.b32.xlu0 %v410, 32
        %v434 = vpop.permute.xlu0 %433
        %vm435 = vcmp.lt.s32.totalorder %v417, 32
        %v436 = vsel %vm435, %v432, %v434
        %v437 = vsel %vm435, %v434, %v432
        %v438 = vld [vmem:[%s1] sm:$0xf]
        %440 = vset.pattern.permute.xlu0 1
        %441 = vperm.xlu0 %440, %v438
        %v442 = vpop.permute.xlu0 %441
        %v444 = vmul.f32 %v437, %v442
        %v445 = vmul.f32 %v436, %v442
        %v446 = vmul.f32 %v444, %v324
        %v447 = vmul.f32 %v445, %v328
        %v448 = vadd.f32 %v429, %v446
        %v449 = vadd.f32 %v430, %v447
        %450 = vrot.lane.b32.xlu0 %v305, 30
        %v451 = vpop.permute.xlu0 %450
        %452 = vrot.lane.b32.xlu0 %v410, 30
        %v453 = vpop.permute.xlu0 %452
        %vm454 = vcmp.lt.s32.totalorder %v417, 30
        %v455 = vsel %vm454, %v451, %v453
        %v456 = vsel %vm454, %v453, %v451
        %v457 = vld [vmem:[%s1] sm:$0xf]
        %459 = vset.pattern.permute.xlu0 2
        %460 = vperm.xlu0 %459, %v457
        %v461 = vpop.permute.xlu0 %460
        %v463 = vmul.f32 %v456, %v461
        %v464 = vmul.f32 %v455, %v461
        %v465 = vmul.f32 %v463, %v337
        %v466 = vmul.f32 %v464, %v341
        %v467 = vadd.f32 %v448, %v465
        %v468 = vadd.f32 %v449, %v466
        %469 = vrot.lane.b32.xlu0 %v305, 2
        %v470 = vpop.permute.xlu0 %469
        %471 = vrot.lane.b32.xlu0 %v410, 2
        %v472 = vpop.permute.xlu0 %471
        %vm473 = vcmp.lt.s32.totalorder %v417, 2
        %v474 = vsel %vm473, %v470, %v472
        %v475 = vsel %vm473, %v472, %v470
        %v476 = vld [vmem:[%s1] sm:$0xf]
        %478 = vset.pattern.permute.xlu0 3
        %479 = vperm.xlu0 %478, %v476
        %v480 = vpop.permute.xlu0 %479
        %v482 = vmul.f32 %v475, %v480
        %v483 = vmul.f32 %v474, %v480
        %v484 = vmul.f32 %v482, %v350
        %v485 = vmul.f32 %v483, %v354
        %v486 = vadd.f32 %v467, %v484
        %v487 = vadd.f32 %v468, %v485
        %488 = vset.pattern.permute.xlu0 4
        %489 = vperm.xlu0 %488, %v476
        %v490 = vpop.permute.xlu0 %489
        %v492 = vunpack.c.l.s4 839922192
        %v493 = vunpack.c.0.s8 %v492
        %v494 = vlaneseq
        %v495 = vshrl.u32 %v494, 7
        %v496 = vsub.s32 %v493, %v495
        %v497 = vrot.slane %v490, %v496
        %v499 = vmul.f32 %v305, %v497
        %v501 = vcombine.high %v499, %v499
        %v503 = vadd.f32 %v486, %v499
        %v504 = vadd.f32 %v487, %v501
        %505 = vrot.lane.b32.xlu0 %v305, 126
        %v506 = vpop.permute.xlu0 %505
        %507 = vrot.lane.b32.xlu0 %v410, 126
        %v508 = vpop.permute.xlu0 %507
        %vm509 = vcmp.lt.s32.totalorder %v417, 126
        %v510 = vsel %vm509, %v506, %v508
        %v511 = vsel %vm509, %v508, %v506
        %v512 = vld [vmem:[%s1] sm:$0xf]
        %514 = vset.pattern.permute.xlu0 5
        %515 = vperm.xlu0 %514, %v512
        %v516 = vpop.permute.xlu0 %515
        %v518 = vmul.f32 %v510, %v516
        %v519 = vmul.f32 %v511, %v516
        %v520 = vmul.f32 %v518, %v363
        %v521 = vmul.f32 %v519, %v367
        %v522 = vadd.f32 %v503, %v520
        %v523 = vadd.f32 %v504, %v521
        %524 = vrot.lane.b32.xlu0 %v305, 98
        %v525 = vpop.permute.xlu0 %524
        %526 = vrot.lane.b32.xlu0 %v410, 98
        %v527 = vpop.permute.xlu0 %526
        %vm528 = vcmp.lt.s32.totalorder %v417, 98
        %v529 = vsel %vm528, %v525, %v527
        %v530 = vsel %vm528, %v527, %v525
        %v531 = vld [vmem:[%s1] sm:$0xf]
        %533 = vset.pattern.permute.xlu0 6
        %534 = vperm.xlu0 %533, %v531
        %v535 = vpop.permute.xlu0 %534
        %v537 = vmul.f32 %v529, %v535
        %v538 = vmul.f32 %v530, %v535
        %v539 = vmul.f32 %v537, %v376
        %v540 = vmul.f32 %v538, %v380
        %v541 = vadd.f32 %v522, %v539
        %v542 = vadd.f32 %v523, %v540
        %543 = vrot.lane.b32.xlu0 %v305, 96
        %v544 = vpop.permute.xlu0 %543
        %545 = vrot.lane.b32.xlu0 %v410, 96
        %v546 = vpop.permute.xlu0 %545
        %vm547 = vcmp.lt.s32.totalorder %v417, 96
        %v548 = vsel %vm547, %v544, %v546
        %v549 = vsel %vm547, %v546, %v544
        %v550 = vld [vmem:[%s1] sm:$0xf]
        %552 = vset.pattern.permute.xlu0 7
        %553 = vperm.xlu0 %552, %v550
        %v554 = vpop.permute.xlu0 %553
        %v556 = vmul.f32 %v548, %v554
        %v557 = vmul.f32 %v549, %v554
        %v558 = vmul.f32 %v556, %v389
        %v559 = vmul.f32 %v557, %v393
        %v560 = vadd.f32 %v541, %v558
        %v561 = vadd.f32 %v542, %v559
        %562 = vrot.lane.b32.xlu0 %v305, 94
        %v563 = vpop.permute.xlu0 %562
        %564 = vrot.lane.b32.xlu0 %v410, 94
        %v565 = vpop.permute.xlu0 %564
        %vm566 = vcmp.lt.s32.totalorder %v417, 94
        %v567 = vsel %vm566, %v563, %v565
        %v568 = vsel %vm566, %v565, %v563
        %v569 = vld [vmem:[%s1] sm:$0xf]
        %571 = vset.pattern.permute.xlu0 8
        %572 = vperm.xlu0 %571, %v569
        %v573 = vpop.permute.xlu0 %572
        %v575 = vmul.f32 %v567, %v573
        %v576 = vmul.f32 %v568, %v573
        %v577 = vmul.f32 %v575, %v402
        %v578 = vmul.f32 %v576, %v406
        %v579 = vadd.f32 %v560, %v577
        %v580 = vadd.f32 %v561, %v578
        %581 = vrot.lane.b32.xlu0 %v579, 34
        %v582 = vpop.permute.xlu0 %581
        %583 = vrot.lane.b32.xlu0 %v580, 34
        %v584 = vpop.permute.xlu0 %583
        %v585 = vsel %vm418, %v582, %v584
        %v586 = vsel %vm418, %v584, %v582
        %587 = vset.pattern.permute.xlu0 9
        %588 = vperm.xlu0 %587, %v569
        %v589 = vpop.permute.xlu0 %588
        %v591 = vmul.f32 %v586, %v589
        %v592 = vmul.f32 %v585, %v589
        %v593 = vmul.f32 %v591, %v311
        %v594 = vmul.f32 %v592, %v315
        %595 = vrot.lane.b32.xlu0 %v579, 32
        %v596 = vpop.permute.xlu0 %595
        %597 = vrot.lane.b32.xlu0 %v580, 32
        %v598 = vpop.permute.xlu0 %597
        %v599 = vsel %vm435, %v596, %v598
        %v600 = vsel %vm435, %v598, %v596
        %601 = vset.pattern.permute.xlu0 10
        %602 = vperm.xlu0 %601, %v569
        %v603 = vpop.permute.xlu0 %602
        %v605 = vmul.f32 %v600, %v603
        %v606 = vmul.f32 %v599, %v603
        %v607 = vmul.f32 %v605, %v324
        %v608 = vmul.f32 %v606, %v328
        %v609 = vadd.f32 %v593, %v607
        %v610 = vadd.f32 %v594, %v608
        %611 = vrot.lane.b32.xlu0 %v579, 30
        %v612 = vpop.permute.xlu0 %611
        %613 = vrot.lane.b32.xlu0 %v580, 30
        %v614 = vpop.permute.xlu0 %613
        %v615 = vsel %vm454, %v612, %v614
        %v616 = vsel %vm454, %v614, %v612
        %617 = vset.pattern.permute.xlu0 11
        %618 = vperm.xlu0 %617, %v569
        %v619 = vpop.permute.xlu0 %618
        %v621 = vmul.f32 %v616, %v619
        %v622 = vmul.f32 %v615, %v619
        %v623 = vmul.f32 %v621, %v337
        %v624 = vmul.f32 %v622, %v341
        %v625 = vadd.f32 %v609, %v623
        %v626 = vadd.f32 %v610, %v624
        %627 = vrot.lane.b32.xlu0 %v579, 2
        %v628 = vpop.permute.xlu0 %627
        %629 = vrot.lane.b32.xlu0 %v580, 2
        %v630 = vpop.permute.xlu0 %629
        %v631 = vsel %vm473, %v628, %v630
        %v632 = vsel %vm473, %v630, %v628
        %633 = vset.pattern.permute.xlu0 12
        %634 = vperm.xlu0 %633, %v569
        %v635 = vpop.permute.xlu0 %634
        %v637 = vmul.f32 %v632, %v635
        %v638 = vmul.f32 %v631, %v635
        %v639 = vmul.f32 %v637, %v350
        %v640 = vmul.f32 %v638, %v354
        %v641 = vadd.f32 %v625, %v639
        %v642 = vadd.f32 %v626, %v640
        %643 = vset.pattern.permute.xlu0 13
        %644 = vperm.xlu0 %643, %v569
        %v645 = vpop.permute.xlu0 %644
        %v647 = vmul.f32 %v579, %v645
        %v648 = vmul.f32 %v580, %v645
        %v649 = vadd.f32 %v641, %v647
        %v650 = vadd.f32 %v642, %v648
        %651 = vrot.lane.b32.xlu0 %v579, 126
        %v652 = vpop.permute.xlu0 %651
        %653 = vrot.lane.b32.xlu0 %v580, 126
        %v654 = vpop.permute.xlu0 %653
        %v655 = vsel %vm509, %v652, %v654
        %v656 = vsel %vm509, %v654, %v652
        %657 = vset.pattern.permute.xlu0 14
        %658 = vperm.xlu0 %657, %v569
        %v659 = vpop.permute.xlu0 %658
        %v661 = vmul.f32 %v655, %v659
        %v662 = vmul.f32 %v656, %v659
        %v663 = vmul.f32 %v661, %v363
        %v664 = vmul.f32 %v662, %v367
        %v665 = vadd.f32 %v649, %v663
        %v666 = vadd.f32 %v650, %v664
        %667 = vrot.lane.b32.xlu0 %v579, 98
        %v668 = vpop.permute.xlu0 %667
        %669 = vrot.lane.b32.xlu0 %v580, 98
        %v670 = vpop.permute.xlu0 %669
        %v671 = vsel %vm528, %v668, %v670
        %v672 = vsel %vm528, %v670, %v668
        %673 = vset.pattern.permute.xlu0 15
        %674 = vperm.xlu0 %673, %v569
        %v675 = vpop.permute.xlu0 %674
        %v677 = vmul.f32 %v671, %v675
        %v678 = vmul.f32 %v672, %v675
        %v679 = vmul.f32 %v677, %v376
        %v680 = vmul.f32 %v678, %v380
        %v681 = vadd.f32 %v665, %v679
        %v682 = vadd.f32 %v666, %v680
        %683 = vrot.lane.b32.xlu0 %v579, 96
        %v684 = vpop.permute.xlu0 %683
        %685 = vrot.lane.b32.xlu0 %v580, 96
        %v686 = vpop.permute.xlu0 %685
        %v687 = vsel %vm547, %v684, %v686
        %v688 = vsel %vm547, %v686, %v684
        %689 = vset.pattern.permute.xlu0 16
        %690 = vperm.xlu0 %689, %v569
        %v691 = vpop.permute.xlu0 %690
        %v693 = vmul.f32 %v687, %v691
        %v694 = vmul.f32 %v688, %v691
        %v695 = vmul.f32 %v693, %v389
        %v696 = vmul.f32 %v694, %v393
        %v697 = vadd.f32 %v681, %v695
        %v698 = vadd.f32 %v682, %v696
        %699 = vrot.lane.b32.xlu0 %v579, 94
        %v700 = vpop.permute.xlu0 %699
        %701 = vrot.lane.b32.xlu0 %v580, 94
        %v702 = vpop.permute.xlu0 %701
        %v703 = vsel %vm566, %v700, %v702
        %v704 = vsel %vm566, %v702, %v700
        %705 = vset.pattern.permute.xlu0 17
        %706 = vperm.xlu0 %705, %v569
        %v707 = vpop.permute.xlu0 %706
        %v709 = vmul.f32 %v703, %v707
        %v710 = vmul.f32 %v704, %v707
        %v711 = vmul.f32 %v709, %v402
        %v712 = vmul.f32 %v710, %v406
        %v713 = vadd.f32 %v697, %v711
        %v714 = vadd.f32 %v698, %v712
        %v715 = vld [vmem:[%s2] sm:$0xff]
        %v716 = vlaneseq
        %v717 = vshrl.u32 %v716, 7
        %v718 = vsub.s32 0, %v717
        %v719 = vrot.slane %v713, %v718
        %v720 = vlaneseq
        %v721 = vshrl.u32 %v720, 7
        %v722 = vsub.s32 0, %v721
        %v723 = vrot.slane %v714, %v722
        %725 = vset.pattern.permute.xlu0 0
        %726 = vperm.xlu0 %725, %v715
        %v727 = vpop.permute.xlu0 %726
        %v729 = vmul.f32 %v719, %v727
        %v730 = vmul.f32 %v723, %v727
        %v731 = vlaneseq
        %v732 = vshrl.u32 %v731, 7
        %v733 = vsub.s32 1, %v732
        %v734 = vrot.slane %v713, %v733
        %v735 = vlaneseq
        %v736 = vshrl.u32 %v735, 7
        %v737 = vsub.s32 1, %v736
        %v738 = vrot.slane %v714, %v737
        %739 = vset.pattern.permute.xlu0 1
        %740 = vperm.xlu0 %739, %v715
        %v741 = vpop.permute.xlu0 %740
        %v743 = vmul.f32 %v734, %v741
        %v744 = vmul.f32 %v738, %v741
        %v745 = vadd.f32 %v729, %v743
        %v746 = vadd.f32 %v730, %v744
        %v747 = vlaneseq
        %v748 = vshrl.u32 %v747, 7
        %v749 = vsub.s32 2, %v748
        %v750 = vrot.slane %v713, %v749
        %v751 = vlaneseq
        %v752 = vshrl.u32 %v751, 7
        %v753 = vsub.s32 2, %v752
        %v754 = vrot.slane %v714, %v753
        %755 = vset.pattern.permute.xlu0 2
        %756 = vperm.xlu0 %755, %v715
        %v757 = vpop.permute.xlu0 %756
        %v759 = vmul.f32 %v750, %v757
        %v760 = vmul.f32 %v754, %v757
        %v761 = vadd.f32 %v745, %v759
        %v762 = vadd.f32 %v746, %v760
        %v763 = vlaneseq
        %v764 = vshrl.u32 %v763, 7
        %v765 = vsub.s32 3, %v764
        %v766 = vrot.slane %v713, %v765
        %v767 = vlaneseq
        %v768 = vshrl.u32 %v767, 7
        %v769 = vsub.s32 3, %v768
        %v770 = vrot.slane %v714, %v769
        %771 = vset.pattern.permute.xlu0 3
        %772 = vperm.xlu0 %771, %v715
        %v773 = vpop.permute.xlu0 %772
        %v775 = vmul.f32 %v766, %v773
        %v776 = vmul.f32 %v770, %v773
        %v777 = vadd.f32 %v761, %v775
        %v778 = vadd.f32 %v762, %v776
        %779 = vst [vmem:[%s283] sm:$0xff] %v777
        %780 = vst [vmem:[%s283 + $0x8] sm:$0xff] %v778
        %v781 = vadd.f32 %v777, %v778
        %782 = vadd.xlane.f32.xlu0 %v781
        %v783 = vpop.xlane.xlu0 %782
        %vm784 = vcmask 7168
        %785 = vst.msk [vmem:[%s299] sm:$0xff] %vm784, %v783
        %v786 = vmul.f32 %v777, %v777
        %v787 = vmul.f32 %v778, %v778
        %v788 = vadd.f32 %v786, %v787
        %789 = vadd.xlane.f32.xlu0 %v788
        %v790 = vpop.xlane.xlu0 %789
        %791 = vst.msk [vmem:[%s303] sm:$0xff] %vm784, %v790
        %s792 = sand.u32 %s122, 1
        %s793 = scalar_lea.sflag [#allocation4], %s792
        %s794 = sand.u32 %s122, 1
        %s795 = smul.addr %s794, 16
        %s796 = scalar_lea.vmem [#allocation7], %s795
        %p797 = scmp.lt.s32.totalorder %s25, 1
        %s798 = scalar_select %p797, %s25, 1
        %s799 = smul.addr %s798, 8
        %s800 = scalar_lea.vmem %s5, %s799
        %p801 = scmp.lt.s32.totalorder %s25, 1
        %s802 = scalar_select %p801, %s25, 1
        %s803 = smul.addr %s802, 8
        %s804 = scalar_lea.vmem %s6, %s803
        // Predicated region
        $region45: #{tpu_custom_call.1} parent=35 // pred_check
          %p805 = pneg %p132
        $region46: #{tpu_custom_call.1} parent=35 // pred_check_branch
          %807 = sbr.rel (%p805) target = $region48
        $region47: #{tpu_custom_call.1} parent=35 // pred_region
          %s809 = ssub.s32 256, 256
          %810 = vsyncadd %s793, %s809
          %s811 = smul.addr %s25, 2
          %s812 = smul.addr %s811, 128
          %s813 = scalar_lea.hbm %s4, %s812
          %s815 = sshll.u32 %s796, 4
          %s816 = int_to_ptr.vmem [resolvable:$true] %s815
          %818 = dma.vmem_to_hbm [thread:$0]  %s816, 256, %s813, %s793
        $region48: #{tpu_custom_call.1} parent=35 // pred_fallthru
          _
        // Predicated region
        $region49: #{tpu_custom_call.1} parent=35 // pred_check
          %p819 = pneg %p158
        $region50: #{tpu_custom_call.1} parent=35 // pred_check_branch
          %821 = sbr.rel (%p819) target = $region52
        $region51: #{tpu_custom_call.1} parent=35 // pred_region
          _
        $region52: #{tpu_custom_call.1} parent=35 // pred_fallthru
          _
        // Predicated region
        $region53: #{tpu_custom_call.1} parent=35 // pred_check
          %p822 = pneg %p184
        $region54: #{tpu_custom_call.1} parent=35 // pred_check_branch
          %824 = sbr.rel (%p822) target = $region56
        $region55: #{tpu_custom_call.1} parent=35 // pred_region
          _
        $region56: #{tpu_custom_call.1} parent=35 // pred_fallthru
          _
      $region36: #{tpu_custom_call.1} parent=5 // pred_fallthru
        _
      %p825 = scmp.le.s32.totalorder 2, %s20
      // Predicated region
      $region57: #{tpu_custom_call.1} parent=5 // pred_check
        %p826 = pneg %p825
      $region58: #{tpu_custom_call.1} parent=5 // pred_check_branch
        %828 = sbr.rel (%p826) target = $region60
      $region59: #{tpu_custom_call.1} parent=5 // pred_region
        %s829 = ssub.s32 %s20, 2
        // Predicated region
        $region61: #{tpu_custom_call.1} parent=59 // pred_check
          %p830 = pneg %p138
        $region62: #{tpu_custom_call.1} parent=59 // pred_check_branch
          %832 = sbr.rel (%p830) target = $region64
        $region63: #{tpu_custom_call.1} parent=59 // pred_region
          %s833 = sand.u32 %s123, 1
          %s834 = scalar_lea.sflag [#allocation4], %s833
          %s835 = sand.u32 %s123, 1
          %s836 = smul.addr %s835, 16
          %s837 = scalar_lea.vmem [#allocation7], %s836
          %838 = dma.done %s834, 256
        $region64: #{tpu_custom_call.1} parent=59 // pred_fallthru
          _
        // Predicated region
        $region65: #{tpu_custom_call.1} parent=59 // pred_check
          %p839 = pneg %p164
        $region66: #{tpu_custom_call.1} parent=59 // pred_check_branch
          %841 = sbr.rel (%p839) target = $region68
        $region67: #{tpu_custom_call.1} parent=59 // pred_region
          %p842 = scmp.lt.s32.totalorder %s26, 1
          %s843 = scalar_select %p842, %s26, 1
          %s844 = smul.addr %s843, 8
          %s845 = scalar_lea.vmem %s5, %s844
        $region68: #{tpu_custom_call.1} parent=59 // pred_fallthru
          _
        // Predicated region
        $region69: #{tpu_custom_call.1} parent=59 // pred_check
          %p846 = pneg %p190
        $region70: #{tpu_custom_call.1} parent=59 // pred_check_branch
          %848 = sbr.rel (%p846) target = $region72
        $region71: #{tpu_custom_call.1} parent=59 // pred_region
          %p849 = scmp.lt.s32.totalorder %s26, 1
          %s850 = scalar_select %p849, %s26, 1
          %s851 = smul.addr %s850, 8
          %s852 = scalar_lea.vmem %s6, %s851
        $region72: #{tpu_custom_call.1} parent=59 // pred_fallthru
          _
      $region60: #{tpu_custom_call.1} parent=5 // pred_fallthru
        _
    $region6: #{tpu_custom_call.1} parent=1 // loop_footer
      %s24 = sadd.s32 1, %s20
    $region7: #{tpu_custom_call.1} parent=1 // loop_footer_branch
      %19 = sbr.rel target = $region3
    $region8: #{tpu_custom_call.1} parent=1 // loop_exit
      _
    %853 = vsyncpa [#allocation3], 1
    %s854 = scalar_lea.sflag [#allocation3], 1
    %855 = vsyncpa %s854, 1
    %856 = vsyncpa [#allocation6], 1
    %857 = vsyncpa [#allocation4], 1
    %s858 = scalar_lea.sflag [#allocation4], 1
    %859 = vsyncpa %s858, 1

</llo_original>
